<compile_context>
chip_gen: v6e
topology: v6e:2x2x1
jax: 0.10.0
libtpu: 0.0.40
codegen_flags: <defaults>
</compile_context>

<pallas_src>
import functools

import jax
import jax.numpy as jnp
from jax.experimental import pallas as pl
from jax.experimental.pallas import tpu as pltpu

_LANES = 128


def _round_up(x, m):
    return ((x + m - 1) // m) * m


def _focal_loss_kernel(pred_ref, true_ref, out_ref, acc_ref, *, gamma, alpha):
    j = pl.program_id(1)

    @pl.when(j == 0)
    def _():
        acc_ref[...] = jnp.zeros_like(acc_ref)

    x = pred_ref[...]                          # (block_rows, 128) f32 logits
    y = true_ref[...].astype(jnp.float32)      # (block_rows, 128) one-hot (from int8)

    # Shared transcendental: e = exp(-|x|) feeds both the stable BCE term and
    # the sigmoid reconstruction.
    e = jnp.exp(-jnp.abs(x))

    # BCEWithLogitsLoss (reduction='none'), numerically stable:
    #   max(x, 0) - x*y + log(1 + exp(-|x|))
    bce = jnp.maximum(x, 0.0) - x * y + jnp.log1p(e)

    # sigmoid(x) = 1/(1+e) if x >= 0 else e/(1+e)
    inv = pl.reciprocal(1.0 + e, approx=True)
    p = jnp.where(x >= 0.0, inv, e * inv)

    p_t = y * p + (1.0 - y) * (1.0 - p)
    alpha_factor = y * alpha + (1.0 - y) * (1.0 - alpha)

    one_minus_pt = jnp.maximum(1.0 - p_t, 0.0)   # clamp: avoid -eps -> NaN in pow
    if gamma == 2.0:
        modulating_factor = one_minus_pt * one_minus_pt
    elif gamma == 1.0:
        modulating_factor = one_minus_pt
    elif gamma == 0.0:
        modulating_factor = jnp.ones_like(one_minus_pt)
    elif float(gamma).is_integer() and 0.0 < gamma <= 8.0:
        modulating_factor = one_minus_pt
        for _ in range(int(gamma) - 1):
            modulating_factor = modulating_factor * one_minus_pt
    else:
        # Non-integer gamma: guard the implicit log against exact zero.
        modulating_factor = jnp.power(jnp.maximum(one_minus_pt, 1e-30), gamma)

    loss = bce * alpha_factor * modulating_factor

    # Partial-sum into a vreg-shaped VMEM accumulator: one VPU add per input
    # vreg (the reshape is a pure (8,128)-tile regrouping, no data movement).
    acc_ref[...] += jnp.sum(loss.reshape(-1, 8, _LANES), axis=0)

    @pl.when(j == pl.num_programs(1) - 1)
    def _():
        # Single cross-lane/sublane reduce + scalar SMEM store per partition.
        out_ref[0, 0] = jnp.sum(acc_ref[...])


def focal_loss(pred, true, gamma=2.0, alpha=0.75, num_classes=2,
               reduction="mean", max_block_rows=2048):
    """pred: (N, num_classes) float logits; true: (N,) int class indices."""
    n, c = pred.shape
    assert c == num_classes
    total = n * c

    # int8 one-hot targets (F.one_hot(true, C).float() is recovered in-kernel).
    onehot = (true[:, None] == jnp.arange(num_classes, dtype=true.dtype)[None, :]
              ).astype(jnp.int8)

    # Lane-dense flatten: (N, C) -> flat -> (padded_rows, 128).
    rows = -(-total // _LANES)
    if rows <= max_block_rows:
        num_parts = 1
        block_rows = _round_up(rows, 32)     # 32 sublanes covers f32 & int8 tiling
    else:
        num_parts = 2                        # megacore split on v7x; serial elsewhere
        block_rows = max_block_rows
    padded_rows = _round_up(rows, num_parts * block_rows)
    steps = padded_rows // (num_parts * block_rows)
    pad = padded_rows * _LANES - total

    # Pad with logit=-1e4 / target=0 => focal-BCE contribution is exactly 0.
    pred_flat = jnp.pad(pred.astype(jnp.float32).reshape(-1), (0, pad),
                        constant_values=-1.0e4)
    true_flat = jnp.pad(onehot.reshape(-1), (0, pad), constant_values=0)
    pred2d = pred_flat.reshape(padded_rows, _LANES)
    true2d = true_flat.reshape(padded_rows, _LANES)

    kernel = functools.partial(_focal_loss_kernel,
                               gamma=float(gamma), alpha=float(alpha))

    partial_sums = pl.pallas_call(
        kernel,
        out_shape=jax.ShapeDtypeStruct((num_parts, 1), jnp.float32),
        grid_spec=pltpu.PrefetchScalarGridSpec(
            num_scalar_prefetch=0,
            grid=(num_parts, steps),
            in_specs=[
                pl.BlockSpec((block_rows, _LANES), lambda p, j: (p * steps + j, 0)),
                pl.BlockSpec((block_rows, _LANES), lambda p, j: (p * steps + j, 0)),
            ],
            out_specs=pl.BlockSpec((1, 1), lambda p, j: (p, 0),
                                   memory_space=pltpu.SMEM),
            scratch_shapes=[pltpu.VMEM((8, _LANES), jnp.float32)],
        ),
        compiler_params=pltpu.CompilerParams(
            dimension_semantics=("parallel", "arbitrary"),
        ),
    )(pred2d, true2d)

    total_sum = jnp.sum(partial_sums)
    if reduction == "mean":          # BCEWithLogitsLoss default
        return total_sum / jnp.float32(total)
    elif reduction == "sum":
        return total_sum
    else:
        # TODO(synk): reduction='none' (elementwise (N, C) output) not implemented.
        raise NotImplementedError("reduction='none' is not supported by this kernel")


def _focal_loss_ref(pred, true, gamma=2.0, alpha=0.75, num_classes=2):
    """Pure-JAX reference mirroring the PyTorch module (reduction='mean')."""
    y = jax.nn.one_hot(true, num_classes, dtype=jnp.float32)
    x = pred.astype(jnp.float32)
    bce = jnp.maximum(x, 0.0) - x * y + jnp.log1p(jnp.exp(-jnp.abs(x)))
    p = jax.nn.sigmoid(x)
    p_t = y * p + (1.0 - y) * (1.0 - p)
    alpha_factor = y * alpha + (1.0 - y) * (1.0 - alpha)
    mod = (1.0 - p_t) ** gamma
    return jnp.mean(bce * alpha_factor * mod)


if __name__ == "__main__":
    key = jax.random.PRNGKey(0)
    k_pred, k_true = jax.random.split(key)

    # Small case (matches the module: num_classes=2), single grid step.
    N, C = 128, 2
    pred = jax.random.normal(k_pred, (N, C), dtype=jnp.float32) * 2.0
    true = jax.random.randint(k_true, (N,), 0, C, dtype=jnp.int32)

    out = focal_loss(pred, true, gamma=2.0, alpha=0.75, num_classes=C)
    out = jax.block_until_ready(out)
    ref = _focal_loss_ref(pred, true, gamma=2.0, alpha=0.75, num_classes=C)
    assert jnp.allclose(out, ref, rtol=5e-3, atol=1e-6), (out, ref)

    # Larger case exercising the multi-partition / multi-step tiled path + padding.
    N2 = 300_000
    k_pred2, k_true2 = jax.random.split(jax.random.PRNGKey(1))
    pred2 = jax.random.normal(k_pred2, (N2, C), dtype=jnp.float32) * 2.0
    true2 = jax.random.randint(k_true2, (N2,), 0, C, dtype=jnp.int32)

    out2 = focal_loss(pred2, true2, gamma=2.0, alpha=0.75, num_classes=C)
    out2 = jax.block_until_ready(out2)
    ref2 = _focal_loss_ref(pred2, true2, gamma=2.0, alpha=0.75, num_classes=C)
    assert jnp.allclose(out2, ref2, rtol=5e-3, atol=1e-6), (out2, ref2)

    print("KERNEL_OK")
</pallas_src>

<mosaic_0001>
module attributes {stable_mosaic.version = 11 : i64} {
  func.func @_focal_loss_kernel(%arg0: i32, %arg1: i32, %arg2: memref<32x128xf32, #tpu.memory_space<vmem>>, %arg3: memref<32x128xi8, #tpu.memory_space<vmem>>, %arg4: memref<1x1xf32, #tpu.memory_space<smem>>, %arg5: memref<8x128xf32, #tpu.memory_space<vmem>>) attributes {dimension_semantics = [#tpu.dimension_semantics<parallel>, #tpu.dimension_semantics<arbitrary>], iteration_bounds = array<i64: 1, 1>, scalar_prefetch = 0 : i64, scratch_operands = 1 : i64, tpu.core_type = #tpu.core_type<tc>, window_params = [{transform_indices = @transform_0, window_bounds = array<i64: 32, 128>}, {transform_indices = @transform_1, window_bounds = array<i64: 32, 128>}, {transform_indices = @transform_2, window_bounds = array<i64: 1, 1>}]} {
    %c0_i32 = arith.constant 0 : i32
    %0 = arith.cmpi eq, %arg1, %c0_i32 : i32
    %1 = arith.extui %0 : i1 to i32
    %c0_i32_0 = arith.constant 0 : i32
    %2 = arith.cmpi ne, %1, %c0_i32_0 : i32
    scf.if %2 {
      %cst_21 = arith.constant 0.000000e+00 : f32
      %52 = vector.broadcast %cst_21 : f32 to vector<8x128xf32>
      %c0_22 = arith.constant 0 : index
      %c0_23 = arith.constant 0 : index
      %53 = vector.load %arg5[%c0_22, %c0_23] : memref<8x128xf32, #tpu.memory_space<vmem>>, vector<8x128xf32>
      tpu.vector_store %arg5[%c0_22, %c0_23], %52 {strides = array<i32>} : memref<8x128xf32, #tpu.memory_space<vmem>>, vector<8x128xf32>,
    } else {
    }
    %c0 = arith.constant 0 : index
    %c0_1 = arith.constant 0 : index
    %3 = vector.load %arg2[%c0, %c0_1] : memref<32x128xf32, #tpu.memory_space<vmem>>, vector<32x128xf32>
    %c0_2 = arith.constant 0 : index
    %c0_3 = arith.constant 0 : index
    %4 = vector.load %arg3[%c0_2, %c0_3] : memref<32x128xi8, #tpu.memory_space<vmem>>, vector<32x128xi8>
    %5 = arith.sitofp %4 : vector<32x128xi8> to vector<32x128xf32>
    %6 = math.absf %3 : vector<32x128xf32>
    %cst = arith.constant 0.000000e+00 : f32
    %7 = vector.broadcast %cst : f32 to vector<32x128xf32>
    %8 = arith.subf %7, %6 : vector<32x128xf32>
    %9 = math.exp %8 : vector<32x128xf32>
    %cst_4 = arith.constant 0.000000e+00 : f32
    %10 = vector.broadcast %cst_4 : f32 to vector<32x128xf32>
    %11 = arith.maximumf %3, %10 : vector<32x128xf32>
    %12 = arith.mulf %3, %5 : vector<32x128xf32>
    %13 = arith.subf %11, %12 : vector<32x128xf32>
    %14 = math.log1p %9 : vector<32x128xf32>
    %15 = arith.addf %13, %14 : vector<32x128xf32>
    %cst_5 = arith.constant 1.000000e+00 : f32
    %16 = vector.broadcast %cst_5 : f32 to vector<32x128xf32>
    %17 = arith.addf %16, %9 : vector<32x128xf32>
    %18 = tpu.reciprocal %17 {approx = true} : vector<32x128xf32> -> vector<32x128xf32>
    %cst_6 = arith.constant 0.000000e+00 : f32
    %19 = vector.broadcast %cst_6 : f32 to vector<32x128xf32>
    %20 = arith.cmpf oge, %3, %19 : vector<32x128xf32>
    %21 = arith.mulf %9, %18 : vector<32x128xf32>
    %22 = arith.select %20, %18, %21 : vector<32x128xi1>, vector<32x128xf32>
    %23 = arith.mulf %5, %22 : vector<32x128xf32>
    %cst_7 = arith.constant 1.000000e+00 : f32
    %24 = vector.broadcast %cst_7 : f32 to vector<32x128xf32>
    %25 = arith.subf %24, %5 : vector<32x128xf32>
    %cst_8 = arith.constant 1.000000e+00 : f32
    %26 = vector.broadcast %cst_8 : f32 to vector<32x128xf32>
    %27 = arith.subf %26, %22 : vector<32x128xf32>
    %28 = arith.mulf %25, %27 : vector<32x128xf32>
    %29 = arith.addf %23, %28 : vector<32x128xf32>
    %cst_9 = arith.constant 7.500000e-01 : f32
    %30 = vector.broadcast %cst_9 : f32 to vector<32x128xf32>
    %31 = arith.mulf %5, %30 : vector<32x128xf32>
    %cst_10 = arith.constant 1.000000e+00 : f32
    %32 = vector.broadcast %cst_10 : f32 to vector<32x128xf32>
    %33 = arith.subf %32, %5 : vector<32x128xf32>
    %cst_11 = arith.constant 2.500000e-01 : f32
    %34 = vector.broadcast %cst_11 : f32 to vector<32x128xf32>
    %35 = arith.mulf %33, %34 : vector<32x128xf32>
    %36 = arith.addf %31, %35 : vector<32x128xf32>
    %cst_12 = arith.constant 1.000000e+00 : f32
    %37 = vector.broadcast %cst_12 : f32 to vector<32x128xf32>
    %38 = arith.subf %37, %29 : vector<32x128xf32>
    %cst_13 = arith.constant 0.000000e+00 : f32
    %39 = vector.broadcast %cst_13 : f32 to vector<32x128xf32>
    %40 = arith.maximumf %38, %39 : vector<32x128xf32>
    %41 = arith.mulf %40, %40 : vector<32x128xf32>
    %42 = arith.mulf %15, %36 : vector<32x128xf32>
    %43 = arith.mulf %42, %41 : vector<32x128xf32>
    %c0_14 = arith.constant 0 : index
    %c0_15 = arith.constant 0 : index
    %44 = vector.load %arg5[%c0_14, %c0_15] : memref<8x128xf32, #tpu.memory_space<vmem>>, vector<8x128xf32>
    %45 = vector.shape_cast %43 : vector<32x128xf32> to vector<4x8x128xf32>
    %cst_16 = arith.constant dense<0.000000e+00> : vector<8x128xf32>
    %46 = vector.multi_reduction <add>, %45, %cst_16 [0] : vector<4x8x128xf32> to vector<8x128xf32>
    %47 = arith.addf %44, %46 : vector<8x128xf32>
    %c0_17 = arith.constant 0 : index
    %c0_18 = arith.constant 0 : index
    %48 = vector.load %arg5[%c0_17, %c0_18] : memref<8x128xf32, #tpu.memory_space<vmem>>, vector<8x128xf32>
    tpu.vector_store %arg5[%c0_17, %c0_18], %47 {strides = array<i32>} : memref<8x128xf32, #tpu.memory_space<vmem>>, vector<8x128xf32>,
    %c0_i32_19 = arith.constant 0 : i32
    %49 = arith.cmpi eq, %arg1, %c0_i32_19 : i32
    %50 = arith.extui %49 : i1 to i32
    %c0_i32_20 = arith.constant 0 : i32
    %51 = arith.cmpi ne, %50, %c0_i32_20 : i32
    scf.if %51 {
      %c0_21 = arith.constant 0 : index
      %c0_22 = arith.constant 0 : index
      %52 = vector.load %arg5[%c0_21, %c0_22] : memref<8x128xf32, #tpu.memory_space<vmem>>, vector<8x128xf32>
      %53 = vector.shape_cast %52 : vector<8x128xf32> to vector<1x8x128xf32>
      %cst_23 = arith.constant dense<0.000000e+00> : vector<1xf32>
      %54 = vector.multi_reduction <add>, %53, %cst_23 [1, 2] : vector<1x8x128xf32> to vector<1xf32>
      %55 = vector.shape_cast %54 : vector<1xf32> to vector<1x1x1xf32>
      %56 = vector.extract %55[0, 0, 0] : f32 from vector<1x1x1xf32>
      %c0_24 = arith.constant 0 : index
      %c0_25 = arith.constant 0 : index
      %57 = memref.load %arg4[%c0_24, %c0_25] : memref<1x1xf32, #tpu.memory_space<smem>>
      memref.store %56, %arg4[%c0_24, %c0_25] : memref<1x1xf32, #tpu.memory_space<smem>>
    } else {
    }
    return
  }
  func.func @transform_0(%arg0: i32, %arg1: i32) -> (i32, i32) {
    %c1_i32 = arith.constant 1 : i32
    %0 = arith.muli %arg0, %c1_i32 : i32
    %1 = arith.addi %0, %arg1 : i32
    %c0_i32 = arith.constant 0 : i32
    %c0_i32_0 = arith.constant 0 : i32
    return %1, %c0_i32 : i32, i32
  }
  func.func @transform_1(%arg0: i32, %arg1: i32) -> (i32, i32) {
    %c1_i32 = arith.constant 1 : i32
    %0 = arith.muli %arg0, %c1_i32 : i32
    %1 = arith.addi %0, %arg1 : i32
    %c0_i32 = arith.constant 0 : i32
    %c0_i32_0 = arith.constant 0 : i32
    return %1, %c0_i32 : i32, i32
  }
  func.func @transform_2(%arg0: i32, %arg1: i32) -> (i32, i32) {
    %c0_i32 = arith.constant 0 : i32
    %c0_i32_0 = arith.constant 0 : i32
    return %arg0, %c0_i32 : i32, i32
  }
}

</mosaic_0001>

<llo_original>
// kernel: tpu_custom_call.1
$region0: #{tpu_custom_call.1}
  #allocation0 [shape = 'u32[]', space=smem, size = 0x4, offset = 0x4, fixed_abs, tag = 'smem constant byte address 0x4 - core index']
  #allocation1 [shape = 'u32[144,128]{1,0:T(1,128)}', space=vmem, size = 0x12000, scoped, tag = 'internal scratch']
  #allocation2 [shape = 'f32[8,128]{1,0:T(8,128)}', space=vmem, size = 0x1000, scoped, tag = 'scratch operand']
  %s0 = inlined_call_operand.hbm [shape: f32[32,128], index: 0, kind: input, shape index: {}]
  %s1 = inlined_call_operand.hbm [shape: s8[32,128], index: 1, kind: input, shape index: {}]
  %s2 = inlined_call_operand.hbm [shape: f32[1,1], index: 2, kind: output, shape index: {}]
  %s3 = sld [smem:[#allocation0]]
  $region34: #{tpu_custom_call.1} parent=0
    _
  %s5 = ssub.s32 1, %s3
  %s6 = scalar_select 0, %s5, %s3
  $region1: #{tpu_custom_call.1} parent=0
    #allocation3 [shape = 'u8[16384]{0}', space=vmem, size = 0x4000, scoped, tag = 'input window, operand 0, single buffered']
    #allocation4 [shape = 's32[1]{0}', space=sflag, size = 0x4, scoped, tag = 'scoped memory for tpu_custom_call.1']
    #allocation5 [shape = 's32[1]{0}', space=sflag, size = 0x4, scoped, tag = 'scoped memory for tpu_custom_call.1']
    #allocation6 [shape = 'u8[4096]{0}', space=vmem, size = 0x1000, scoped, tag = 'input window, operand 1, single buffered']
    #allocation7 [shape = 's32[1]{0}', space=sflag, size = 0x4, scoped, tag = 'scoped memory for tpu_custom_call.1']
    #allocation8 [shape = 'u8[512]{0}', space=smem, size = 0x200, scoped, tag = 'output window, operand 0, single buffered']
    %7 = vsyncpa [#allocation4], 0
    %8 = vsyncpa [#allocation7], 0
    %9 = vsyncpa [#allocation5], 0
    // Predicated region
    $region2: #{tpu_custom_call.1} parent=1 // pred_check
      _
    $region3: #{tpu_custom_call.1} parent=1 // pred_check_branch
      %11 = sbr.rel (0) target = $region5
    $region4: #{tpu_custom_call.1} parent=1 // pred_region
      %s12 = sadd.s32 0, 0
      %s13 = smul.u32 4, %s12
      %s15 = ssub.s32 512, 512
      %16 = vsyncadd [#allocation4], %s15
      %s17 = smul.addr %s13, 128
      %s18 = scalar_lea.hbm %s0, %s17
      %s19 = sshll.u32 [#allocation3], 4
      %s20 = int_to_ptr.vmem [resolvable:$true] %s19
      %25 = dma.hbm_to_vmem [thread:$0]  %s18, 512, %s20, [#allocation4], 128, 128, 8
    $region5: #{tpu_custom_call.1} parent=1 // pred_fallthru
      _
    // Predicated region
    $region6: #{tpu_custom_call.1} parent=1 // pred_check
      _
    $region7: #{tpu_custom_call.1} parent=1 // pred_check_branch
      %27 = sbr.rel (0) target = $region9
    $region8: #{tpu_custom_call.1} parent=1 // pred_region
      %s28 = sadd.s32 0, 0
      %s30 = ssub.s32 128, 128
      %31 = vsyncadd [#allocation7], %s30
      %s32 = smul.addr %s28, 128
      %s33 = scalar_lea.hbm %s1, %s32
      %s35 = sshll.u32 [#allocation6], 4
      %s36 = int_to_ptr.vmem [resolvable:$true] %s35
      %38 = dma.hbm_to_vmem [thread:$0]  %s33, 128, %s36, [#allocation7]
    $region9: #{tpu_custom_call.1} parent=1 // pred_fallthru
      _
    // Predicated region
    $region10: #{tpu_custom_call.1} parent=1 // pred_check
      _
    $region11: #{tpu_custom_call.1} parent=1 // pred_check_branch
      %40 = sbr.rel (0) target = $region13
    $region12: #{tpu_custom_call.1} parent=1 // pred_region
      %41 = dma.done [#allocation4], 512
    $region13: #{tpu_custom_call.1} parent=1 // pred_fallthru
      _
    // Predicated region
    $region14: #{tpu_custom_call.1} parent=1 // pred_check
      _
    $region15: #{tpu_custom_call.1} parent=1 // pred_check_branch
      %43 = sbr.rel (0) target = $region17
    $region16: #{tpu_custom_call.1} parent=1 // pred_region
      %44 = dma.done [#allocation7], 128
    $region17: #{tpu_custom_call.1} parent=1 // pred_fallthru
      _
    %s45 = sadd.s32 0, 0
    %s46 = smul.u32 4, %s45
    %s47 = sadd.s32 0, 0
    %p48 = scmp.eq.s32.totalorder 0, 0
    // Predicated region
    $region18: #{tpu_custom_call.1} parent=1 // pred_check
      %p49 = pneg %p48
    $region19: #{tpu_custom_call.1} parent=1 // pred_check_branch
      %51 = sbr.rel (%p49) target = $region21
    $region20: #{tpu_custom_call.1} parent=1 // pred_region
      %52 = vst [vmem:[#allocation2] sm:$0xff] 0.0
    $region21: #{tpu_custom_call.1} parent=1 // pred_fallthru
      _
    %v53 = vld [vmem:[#allocation3] sm:$0xff]
    %v54 = vld [vmem:[#allocation3 + $0x8] sm:$0xff]
    %v55 = vld [vmem:[#allocation3 + $0x10] sm:$0xff]
    %v56 = vld [vmem:[#allocation3 + $0x18] sm:$0xff]
    %v57 = vld [vmem:[#allocation6] sm:$0xff]
    %v58 = vunpack.c.0.s8 %v57
    %v59 = vunpack.c.1.s8 %v57
    %v60 = vunpack.c.2.s8 %v57
    %v61 = vunpack.c.3.s8 %v57
    %v62 = vcvt.s32.f32 %v58
    %v63 = vcvt.s32.f32 %v59
    %v64 = vcvt.s32.f32 %v60
    %v65 = vcvt.s32.f32 %v61
    %v66 = vand.u32 2147483647, %v53
    %v67 = vand.u32 2147483647, %v54
    %v68 = vand.u32 2147483647, %v55
    %v69 = vand.u32 2147483647, %v56
    %v70 = vsub.f32 0.0, %v66
    %v71 = vsub.f32 0.0, %v67
    %v72 = vsub.f32 0.0, %v68
    %v73 = vsub.f32 0.0, %v69
    %v74 = vmul.f32 %v70, 1.442695
    %v75 = vpow.pop %v74
    %v76 = vmul.f32 %v71, 1.442695
    %v77 = vpow.pop %v76
    %v78 = vmul.f32 %v72, 1.442695
    %v79 = vpow.pop %v78
    %v80 = vmul.f32 %v73, 1.442695
    %v81 = vpow.pop %v80
    %v82 = vmax.f32 %v53, 0.0
    %v83 = vmax.f32 %v54, 0.0
    %v84 = vmax.f32 %v55, 0.0
    %v85 = vmax.f32 %v56, 0.0
    %v86 = vmul.f32 %v53, %v62
    %v87 = vmul.f32 %v54, %v63
    %v88 = vmul.f32 %v55, %v64
    %v89 = vmul.f32 %v56, %v65
    %v90 = vsub.f32 %v82, %v86
    %v91 = vsub.f32 %v83, %v87
    %v92 = vsub.f32 %v84, %v88
    %v93 = vsub.f32 %v85, %v89
    %v94 = vadd.f32 %v75, 1.0
    %v95 = vlog2.pop %v94
    %v96 = vmul.f32 %v95, 0.6931472
    %v97 = vmul.f32 -0.5, %v75
    %v98 = vadd.f32 %v97, 1.0
    %v99 = vmul.f32 %v98, %v75
    %v100 = vand.u32 2147483647, %v75
    %vm101 = vcmp.lt.f32.partialorder %v100, 0.0004427343
    %v102 = vsel %vm101, %v99, %v96
    %v103 = vadd.f32 %v77, 1.0
    %v104 = vlog2.pop %v103
    %v105 = vmul.f32 %v104, 0.6931472
    %v106 = vmul.f32 -0.5, %v77
    %v107 = vadd.f32 %v106, 1.0
    %v108 = vmul.f32 %v107, %v77
    %v109 = vand.u32 2147483647, %v77
    %vm110 = vcmp.lt.f32.partialorder %v109, 0.0004427343
    %v111 = vsel %vm110, %v108, %v105
    %v112 = vadd.f32 %v79, 1.0
    %v113 = vlog2.pop %v112
    %v114 = vmul.f32 %v113, 0.6931472
    %v115 = vmul.f32 -0.5, %v79
    %v116 = vadd.f32 %v115, 1.0
    %v117 = vmul.f32 %v116, %v79
    %v118 = vand.u32 2147483647, %v79
    %vm119 = vcmp.lt.f32.partialorder %v118, 0.0004427343
    %v120 = vsel %vm119, %v117, %v114
    %v121 = vadd.f32 %v81, 1.0
    %v122 = vlog2.pop %v121
    %v123 = vmul.f32 %v122, 0.6931472
    %v124 = vmul.f32 -0.5, %v81
    %v125 = vadd.f32 %v124, 1.0
    %v126 = vmul.f32 %v125, %v81
    %v127 = vand.u32 2147483647, %v81
    %vm128 = vcmp.lt.f32.partialorder %v127, 0.0004427343
    %v129 = vsel %vm128, %v126, %v123
    %v130 = vadd.f32 %v90, %v102
    %v131 = vadd.f32 %v91, %v111
    %v132 = vadd.f32 %v92, %v120
    %v133 = vadd.f32 %v93, %v129
    %v134 = vadd.f32 %v75, 1.0
    %v135 = vadd.f32 %v77, 1.0
    %v136 = vadd.f32 %v79, 1.0
    %v137 = vadd.f32 %v81, 1.0
    %v138 = vrcp.pop %v134
    %v139 = vrcp.pop %v135
    %v140 = vrcp.pop %v136
    %v141 = vrcp.pop %v137
    %vm142 = vcmp.ge.f32.partialorder %v53, 0.0
    %vm143 = vcmp.ge.f32.partialorder %v54, 0.0
    %vm144 = vcmp.ge.f32.partialorder %v55, 0.0
    %vm145 = vcmp.ge.f32.partialorder %v56, 0.0
    %v146 = vmul.f32 %v75, %v138
    %v147 = vmul.f32 %v77, %v139
    %v148 = vmul.f32 %v79, %v140
    %v149 = vmul.f32 %v81, %v141
    %v150 = vsel %vm142, %v138, %v146
    %v151 = vsel %vm143, %v139, %v147
    %v152 = vsel %vm144, %v140, %v148
    %v153 = vsel %vm145, %v141, %v149
    %v154 = vmul.f32 %v62, %v150
    %v155 = vmul.f32 %v63, %v151
    %v156 = vmul.f32 %v64, %v152
    %v157 = vmul.f32 %v65, %v153
    %v158 = vsub.f32 1.0, %v62
    %v159 = vsub.f32 1.0, %v63
    %v160 = vsub.f32 1.0, %v64
    %v161 = vsub.f32 1.0, %v65
    %v162 = vsub.f32 1.0, %v150
    %v163 = vsub.f32 1.0, %v151
    %v164 = vsub.f32 1.0, %v152
    %v165 = vsub.f32 1.0, %v153
    %v166 = vmul.f32 %v158, %v162
    %v167 = vmul.f32 %v159, %v163
    %v168 = vmul.f32 %v160, %v164
    %v169 = vmul.f32 %v161, %v165
    %v170 = vadd.f32 %v154, %v166
    %v171 = vadd.f32 %v155, %v167
    %v172 = vadd.f32 %v156, %v168
    %v173 = vadd.f32 %v157, %v169
    %v174 = vmul.f32 %v62, 0.75
    %v175 = vmul.f32 %v63, 0.75
    %v176 = vmul.f32 %v64, 0.75
    %v177 = vmul.f32 %v65, 0.75
    %v178 = vmul.f32 %v158, 0.25
    %v179 = vmul.f32 %v159, 0.25
    %v180 = vmul.f32 %v160, 0.25
    %v181 = vmul.f32 %v161, 0.25
    %v182 = vadd.f32 %v174, %v178
    %v183 = vadd.f32 %v175, %v179
    %v184 = vadd.f32 %v176, %v180
    %v185 = vadd.f32 %v177, %v181
    %v186 = vsub.f32 1.0, %v170
    %v187 = vsub.f32 1.0, %v171
    %v188 = vsub.f32 1.0, %v172
    %v189 = vsub.f32 1.0, %v173
    %v190 = vmax.f32 %v186, 0.0
    %v191 = vmax.f32 %v187, 0.0
    %v192 = vmax.f32 %v188, 0.0
    %v193 = vmax.f32 %v189, 0.0
    %v194 = vmul.f32 %v190, %v190
    %v195 = vmul.f32 %v191, %v191
    %v196 = vmul.f32 %v192, %v192
    %v197 = vmul.f32 %v193, %v193
    %v198 = vmul.f32 %v130, %v182
    %v199 = vmul.f32 %v131, %v183
    %v200 = vmul.f32 %v132, %v184
    %v201 = vmul.f32 %v133, %v185
    %v202 = vmul.f32 %v198, %v194
    %v203 = vmul.f32 %v199, %v195
    %v204 = vmul.f32 %v200, %v196
    %v205 = vmul.f32 %v201, %v197
    %v206 = vld [vmem:[#allocation2] sm:$0xff]
    %v207 = vadd.f32 %v202, %v203
    %v208 = vadd.f32 %v207, %v204
    %v209 = vadd.f32 %v208, %v205
    %v210 = vadd.f32 %v206, %v209
    %211 = vst [vmem:[#allocation2] sm:$0xff] %v210
    // Predicated region
    $region22: #{tpu_custom_call.1} parent=1 // pred_check
      %p212 = pneg %p48
    $region23: #{tpu_custom_call.1} parent=1 // pred_check_branch
      %214 = sbr.rel (%p212) target = $region25
    $region24: #{tpu_custom_call.1} parent=1 // pred_region
      %v215 = vld [vmem:[#allocation2] sm:$0xff]
      %216 = vadd.xlane.f32.xlu0 %v215
      %v217 = vpop.xlane.xlu0 %216
      %v218 = vrot.slane %v217, 4
      %v219 = vadd.f32 %v217, %v218
      %v220 = vrot.slane %v219, 2
      %v221 = vadd.f32 %v219, %v220
      %v222 = vrot.slane %v221, 1
      %v223 = vadd.f32 %v221, %v222
      %s224 = vtos %v223
      %s225 = scalar_lea.smem [#allocation8], 0
      %226 = sst [smem:[%s225]] %s224
    $region25: #{tpu_custom_call.1} parent=1 // pred_fallthru
      _
    // Predicated region
    $region26: #{tpu_custom_call.1} parent=1 // pred_check
      _
    $region27: #{tpu_custom_call.1} parent=1 // pred_check_branch
      %228 = sbr.rel (0) target = $region29
    $region28: #{tpu_custom_call.1} parent=1 // pred_region
      %s230 = ssub.s32 16, 16
      %231 = vsyncadd [#allocation5], %s230
      %234 = dma.smem_to_hbm [#allocation8], 16, %s2, [#allocation5]
    $region29: #{tpu_custom_call.1} parent=1 // pred_fallthru
      _
    // Predicated region
    $region30: #{tpu_custom_call.1} parent=1 // pred_check
      _
    $region31: #{tpu_custom_call.1} parent=1 // pred_check_branch
      %236 = sbr.rel (0) target = $region33
    $region32: #{tpu_custom_call.1} parent=1 // pred_region
      %237 = dma.done [#allocation5], 16
    $region33: #{tpu_custom_call.1} parent=1 // pred_fallthru
      _
    %238 = sfence
    %239 = vsyncpa [#allocation4], 1
    %240 = vsyncpa [#allocation7], 1
    %241 = vsyncpa [#allocation5], 1

</llo_original>
